<compile_context>
chip_gen: v7x
topology: tpu7x:2x2x1
jax: 0.10.0
libtpu: 0.0.40
codegen_flags: <defaults>
</compile_context>

<pallas_src>
import functools

import jax
import jax.numpy as jnp
from jax import lax
from jax.experimental import pallas as pl
from jax.experimental.pallas import tpu as pltpu

_LANE = 128
_MAX_BATCH_TILE = 512  # multiple of 8; sized so 2x double-buffered x tiles fit v7x VMEM


def _linear_kernel(x_ref, w_ref, b_ref, o_ref):
    # x: (TB, F), w: (Cpad, F)  -> contract on F (keeps W's lane axis dense).
    x = x_ref[...].astype(jnp.float32)
    w = w_ref[...].astype(jnp.float32)
    y = lax.dot_general(
        x, w,
        dimension_numbers=(((1,), (1,)), ((), ())),
        preferred_element_type=jnp.float32,
    )  # (TB, Cpad) on the MXU
    o_ref[...] = (y + b_ref[...].astype(jnp.float32)).astype(o_ref.dtype)


def _dropout_linear_kernel(x_ref, m_ref, w_ref, b_ref, o_ref):
    # m is pre-scaled inverted-dropout mask: values are 0 or 1/keep_prob.
    x = x_ref[...].astype(jnp.float32) * m_ref[...].astype(jnp.float32)
    w = w_ref[...].astype(jnp.float32)
    y = lax.dot_general(
        x, w,
        dimension_numbers=(((1,), (1,)), ((), ())),
        preferred_element_type=jnp.float32,
    )
    o_ref[...] = (y + b_ref[...].astype(jnp.float32)).astype(o_ref.dtype)


def _round_up(v: int, m: int) -> int:
    return ((v + m - 1) // m) * m


@functools.partial(jax.jit, static_argnames=("dropout", "training"))
def baseline_classifier(x, w, b, key=None, *, dropout: float = 0.15, training: bool = False):
    """Forward of BaseLineClassifer.

    x: (B, F) float, w: (C, F) float (PyTorch nn.Linear layout), b: (C,) float.
    Returns (B, C).
    """
    if not (0.0 <= dropout < 1.0):
        raise ValueError("dropout must be in [0, 1)")
    B, F = x.shape
    C = w.shape[0]

    # Lane-dense class dimension: pad C up to a multiple of 128.
    Cpad = _round_up(max(C, 1), _LANE)
    w_p = jnp.pad(w, ((0, Cpad - C), (0, 0)))          # (Cpad, F)
    b_p = jnp.pad(b, (0, Cpad - C)).reshape(1, Cpad)   # (1, Cpad)

    # Batch tiling: largest multiple-of-8 tile up to _MAX_BATCH_TILE.
    TB = min(_MAX_BATCH_TILE, _round_up(B, 8))
    Bp = _round_up(B, TB)
    if Bp != B:
        x = jnp.pad(x, ((0, Bp - B), (0, 0)))
    grid = (Bp // TB,)

    use_mask = bool(training) and dropout > 0.0
    if use_mask:
        keep = 1.0 - dropout
        # TODO(synk): on a pure-TPU build, generate this mask in-kernel with
        # pltpu.prng_seed(seed + pl.program_id(0)) / pltpu.prng_random_bits to avoid
        # streaming an extra (B, F) array; done host-side here because prng_seed has
        # no lowering under Pallas interpret mode.
        mask = jax.random.bernoulli(key, keep, (Bp, F)).astype(x.dtype) * (1.0 / keep)

    x_spec = pl.BlockSpec((TB, F), lambda i: (i, 0))        # streamed, double-buffered
    w_spec = pl.BlockSpec((Cpad, F), lambda i: (0, 0))      # VMEM-resident
    b_spec = pl.BlockSpec((1, Cpad), lambda i: (0, 0))      # VMEM-resident
    o_spec = pl.BlockSpec((TB, Cpad), lambda i: (i, 0))     # lane-dense stores

    if use_mask:
        kernel = _dropout_linear_kernel
        in_specs = [x_spec, pl.BlockSpec((TB, F), lambda i: (i, 0)), w_spec, b_spec]
        operands = (x, mask, w_p, b_p)
    else:
        kernel = _linear_kernel
        in_specs = [x_spec, w_spec, b_spec]
        operands = (x, w_p, b_p)

    out = pl.pallas_call(
        kernel,
        out_shape=jax.ShapeDtypeStruct((Bp, Cpad), x.dtype),
        grid=grid,
        in_specs=in_specs,
        out_specs=o_spec,
        compiler_params=pltpu.CompilerParams(
            dimension_semantics=("parallel",),  # lets v7x shard batch tiles over 2 TCs
        ),
    )(*operands)

    return out[:B, :C]


def init_params(key, in_features: int, num_classes: int):
    """Deterministic nn.Linear-style init: U(-k, k) with k = 1/sqrt(in_features)."""
    kw, kb = jax.random.split(key)
    bound = 1.0 / jnp.sqrt(jnp.float32(in_features))
    w = jax.random.uniform(kw, (num_classes, in_features), jnp.float32, -bound, bound)
    b = jax.random.uniform(kb, (num_classes,), jnp.float32, -bound, bound)
    return w, b


if __name__ == "__main__":
    # Small shapes consistent with the module (in_features_head=2048, num_classes=20
    # in the original; feature dim scaled down here).
    B, F, C = 8, 256, 20
    dropout = 0.15

    key = jax.random.PRNGKey(0)
    kx, kp, kd = jax.random.split(key, 3)
    x = jax.random.normal(kx, (B, F), jnp.float32)
    w, b = init_params(kp, F, C)

    # Eval-mode forward (nn.Dropout is identity) — deterministic, checked vs. pure JAX.
    out_eval = baseline_classifier(x, w, b, dropout=dropout, training=False)
    out_eval = jax.block_until_ready(out_eval)
    ref = x @ w.T + b
    assert out_eval.shape == (B, C)
    assert jnp.allclose(out_eval, ref, atol=1e-4, rtol=1e-4), "mismatch vs reference linear"

    # Training-mode forward (inverted dropout fused with the matmul inside the kernel).
    out_train = baseline_classifier(x, w, b, kd, dropout=dropout, training=True)
    out_train = jax.block_until_ready(out_train)
    assert out_train.shape == (B, C)
    assert bool(jnp.all(jnp.isfinite(out_train)))

    print("KERNEL_OK")
</pallas_src>

<mosaic_0001>
module attributes {stable_mosaic.version = 11 : i64} {
  func.func @_linear_kernel(%arg0: i32, %arg1: memref<8x256xf32, #tpu.memory_space<vmem>>, %arg2: memref<128x256xf32, #tpu.memory_space<vmem>>, %arg3: memref<1x128xf32, #tpu.memory_space<vmem>>, %arg4: memref<8x128xf32, #tpu.memory_space<vmem>>) attributes {dimension_semantics = [#tpu.dimension_semantics<parallel>], iteration_bounds = array<i64: 1>, scalar_prefetch = 0 : i64, scratch_operands = 0 : i64, tpu.core_type = #tpu.core_type<tc>, window_params = [{transform_indices = @transform_0, window_bounds = array<i64: 8, 256>}, {pipeline_mode = #tpu.pipeline_mode<synchronous>, transform_indices = @transform_1, window_bounds = array<i64: 128, 256>}, {pipeline_mode = #tpu.pipeline_mode<synchronous>, transform_indices = @transform_2, window_bounds = array<i64: 1, 128>}, {transform_indices = @transform_3, window_bounds = array<i64: 8, 128>}]} {
    %c0 = arith.constant 0 : index
    %c0_0 = arith.constant 0 : index
    %0 = vector.load %arg1[%c0, %c0_0] : memref<8x256xf32, #tpu.memory_space<vmem>>, vector<8x256xf32>
    %c0_1 = arith.constant 0 : index
    %c0_2 = arith.constant 0 : index
    %1 = vector.load %arg2[%c0_1, %c0_2] : memref<128x256xf32, #tpu.memory_space<vmem>>, vector<128x256xf32>
    %cst = arith.constant dense<0.000000e+00> : vector<8x128xf32>
    %2 = tpu.matmul %0, %1, %cst {dimension_numbers = #tpu.dot_dimension_numbers<[1], [1], [0], [0], [0, 0, 1, 0], [], []>} : vector<8x256xf32>, vector<128x256xf32>, vector<8x128xf32> -> vector<8x128xf32>
    %c0_3 = arith.constant 0 : index
    %c0_4 = arith.constant 0 : index
    %3 = vector.load %arg3[%c0_3, %c0_4] : memref<1x128xf32, #tpu.memory_space<vmem>>, vector<1x128xf32>
    %4 = vector.broadcast %3 : vector<1x128xf32> to vector<8x128xf32>
    %5 = arith.addf %2, %4 : vector<8x128xf32>
    %c0_5 = arith.constant 0 : index
    %c0_6 = arith.constant 0 : index
    %6 = vector.load %arg4[%c0_5, %c0_6] : memref<8x128xf32, #tpu.memory_space<vmem>>, vector<8x128xf32>
    tpu.vector_store %arg4[%c0_5, %c0_6], %5 {strides = array<i32>} : memref<8x128xf32, #tpu.memory_space<vmem>>, vector<8x128xf32>,
    return
  }
  func.func @transform_0(%arg0: i32) -> (i32, i32) {
    %c0_i32 = arith.constant 0 : i32
    %c0_i32_0 = arith.constant 0 : i32
    return %arg0, %c0_i32 : i32, i32
  }
  func.func @transform_1(%arg0: i32) -> (i32, i32) {
    %c0_i32 = arith.constant 0 : i32
    %c0_i32_0 = arith.constant 0 : i32
    %c0_i32_1 = arith.constant 0 : i32
    return %c0_i32, %c0_i32_0 : i32, i32
  }
  func.func @transform_2(%arg0: i32) -> (i32, i32) {
    %c0_i32 = arith.constant 0 : i32
    %c0_i32_0 = arith.constant 0 : i32
    %c0_i32_1 = arith.constant 0 : i32
    return %c0_i32, %c0_i32_0 : i32, i32
  }
  func.func @transform_3(%arg0: i32) -> (i32, i32) {
    %c0_i32 = arith.constant 0 : i32
    %c0_i32_0 = arith.constant 0 : i32
    return %arg0, %c0_i32 : i32, i32
  }
}

</mosaic_0001>

<llo_original>
// kernel: baseline_classifier.1
$region0: #{baseline_classifier.1}
  #allocation0 [shape = 'u32[]', space=smem, size = 0x4, offset = 0x4, fixed_abs, tag = 'smem constant byte address 0x4 - core index']
  #allocation1 [shape = 'u32[144,128]{1,0:T(1,128)}', space=vmem, size = 0x12000, scoped, tag = 'internal scratch']
  %s0 = inlined_call_operand.vmem [shape: f32[8,256], index: 0, kind: input, shape index: {}]
  %s1 = inlined_call_operand.vmem [shape: f32[128,256], index: 1, kind: input, shape index: {}]
  %s2 = inlined_call_operand.vmem [shape: f32[1,128], index: 2, kind: input, shape index: {}]
  %s3 = inlined_call_operand.hbm [shape: f32[8,128], index: 3, kind: output, shape index: {}]
  %s4 = sld [smem:[#allocation0]]
  $region22: #{baseline_classifier.1} parent=0
    _
  %s6 = ssub.s32 1, %s4
  %s7 = scalar_select 0, %s6, %s4
  $region1: #{baseline_classifier.1} parent=0
    #allocation2 [shape = 'u8[4096]{0}', space=vmem, size = 0x1000, scoped, tag = 'output window, operand 0, single buffered']
    #allocation3 [shape = 's32[1]{0}', space=sflag, size = 0x4, scoped, tag = 'scoped memory for baseline_classifier.1']
    %8 = vsyncpa [#allocation3], 0
    // Predicated region
    $region2: #{baseline_classifier.1} parent=1 // pred_check
      _
    $region3: #{baseline_classifier.1} parent=1 // pred_check_branch
      %10 = sbr.rel (0) target = $region5
    $region4: #{baseline_classifier.1} parent=1 // pred_region
      _
    $region5: #{baseline_classifier.1} parent=1 // pred_fallthru
      _
    // Predicated region
    $region6: #{baseline_classifier.1} parent=1 // pred_check
      _
    $region7: #{baseline_classifier.1} parent=1 // pred_check_branch
      %12 = sbr.rel (0) target = $region9
    $region8: #{baseline_classifier.1} parent=1 // pred_region
      _
    $region9: #{baseline_classifier.1} parent=1 // pred_fallthru
      _
    // Predicated region
    $region10: #{baseline_classifier.1} parent=1 // pred_check
      _
    $region11: #{baseline_classifier.1} parent=1 // pred_check_branch
      %14 = sbr.rel (0) target = $region13
    $region12: #{baseline_classifier.1} parent=1 // pred_region
      _
    $region13: #{baseline_classifier.1} parent=1 // pred_fallthru
      _
    %v15 = vld [vmem:[%s0] sm:$0xff]
    %v16 = vld [vmem:[%s0 + $0x8] sm:$0xff]
    %v17 = vld [vmem:[%s1] sm:$0xff]
    %v18 = vld [vmem:[%s1 + $0x8] sm:$0xff]
    %v19 = vld [vmem:[%s1 + $0x10] sm:$0xff]
    %v20 = vld [vmem:[%s1 + $0x18] sm:$0xff]
    %v21 = vld [vmem:[%s1 + $0x20] sm:$0xff]
    %v22 = vld [vmem:[%s1 + $0x28] sm:$0xff]
    %v23 = vld [vmem:[%s1 + $0x30] sm:$0xff]
    %v24 = vld [vmem:[%s1 + $0x38] sm:$0xff]
    %v25 = vld [vmem:[%s1 + $0x40] sm:$0xff]
    %v26 = vld [vmem:[%s1 + $0x48] sm:$0xff]
    %v27 = vld [vmem:[%s1 + $0x50] sm:$0xff]
    %v28 = vld [vmem:[%s1 + $0x58] sm:$0xff]
    %v29 = vld [vmem:[%s1 + $0x60] sm:$0xff]
    %v30 = vld [vmem:[%s1 + $0x68] sm:$0xff]
    %v31 = vld [vmem:[%s1 + $0x70] sm:$0xff]
    %v32 = vld [vmem:[%s1 + $0x78] sm:$0xff]
    %v33 = vld [vmem:[%s1 + $0x80] sm:$0xff]
    %v34 = vld [vmem:[%s1 + $0x88] sm:$0xff]
    %v35 = vld [vmem:[%s1 + $0x90] sm:$0xff]
    %v36 = vld [vmem:[%s1 + $0x98] sm:$0xff]
    %v37 = vld [vmem:[%s1 + $0xa0] sm:$0xff]
    %v38 = vld [vmem:[%s1 + $0xa8] sm:$0xff]
    %v39 = vld [vmem:[%s1 + $0xb0] sm:$0xff]
    %v40 = vld [vmem:[%s1 + $0xb8] sm:$0xff]
    %v41 = vld [vmem:[%s1 + $0xc0] sm:$0xff]
    %v42 = vld [vmem:[%s1 + $0xc8] sm:$0xff]
    %v43 = vld [vmem:[%s1 + $0xd0] sm:$0xff]
    %v44 = vld [vmem:[%s1 + $0xd8] sm:$0xff]
    %v45 = vld [vmem:[%s1 + $0xe0] sm:$0xff]
    %v46 = vld [vmem:[%s1 + $0xe8] sm:$0xff]
    %v47 = vld [vmem:[%s1 + $0xf0] sm:$0xff]
    %v48 = vld [vmem:[%s1 + $0xf8] sm:$0xff]
    %v49 = vld [vmem:[%s2] sm:$0x1]
    %v51 = vlaneseq
    %v52 = vshrl.u32 %v51, 7
    %v53 = vsub.s32 0, %v52
    %v54 = vrot.slane %v49, %v53
    %56 = vmatprep.subr.mxu0 %v18
    %57 = vmatpush1.xpose.msra.mxu0 %v17
    %58 = vmatprep.subr.mxu0 %v20
    %59 = vmatpush1.xpose.msra.mxu0 %v19
    %60 = vmatprep.subr.mxu0 %v22
    %61 = vmatpush1.xpose.msra.mxu0 %v21
    %62 = vmatprep.subr.mxu0 %v24
    %63 = vmatpush1.xpose.msra.mxu0 %v23
    %64 = vmatprep.subr.mxu0 %v26
    %65 = vmatpush1.xpose.msra.mxu0 %v25
    %66 = vmatprep.subr.mxu0 %v28
    %67 = vmatpush1.xpose.msra.mxu0 %v27
    %68 = vmatprep.subr.mxu0 %v30
    %69 = vmatpush1.xpose.msra.mxu0 %v29
    %70 = vmatprep.subr.mxu0 %v32
    %71 = vmatpush1.xpose.msra.mxu0 %v31
    %72 = vmatprep.subr.mxu0 %v34
    %73 = vmatpush1.xpose.msra.mxu0 %v33
    %74 = vmatprep.subr.mxu0 %v36
    %75 = vmatpush1.xpose.msra.mxu0 %v35
    %76 = vmatprep.subr.mxu0 %v38
    %77 = vmatpush1.xpose.msra.mxu0 %v37
    %78 = vmatprep.subr.mxu0 %v40
    %79 = vmatpush1.xpose.msra.mxu0 %v39
    %80 = vmatprep.subr.mxu0 %v42
    %81 = vmatpush1.xpose.msra.mxu0 %v41
    %82 = vmatprep.subr.mxu0 %v44
    %83 = vmatpush1.xpose.msra.mxu0 %v43
    %84 = vmatprep.subr.mxu0 %v46
    %85 = vmatpush1.xpose.msra.mxu0 %v45
    %86 = vmatprep.subr.mxu0 %v48
    %87 = vmatpush1.xpose.msra.mxu0 %v47
    %88 = vmatprep.subr.mxu0 0.0
    %89 = vmatpush1.xpose.msra.mxu0 0.0
    %90 = vmatprep.subr.mxu0 0.0
    %91 = vmatpush1.xpose.msra.mxu0 0.0
    %92 = vmatprep.subr.mxu0 0.0
    %93 = vmatpush1.xpose.msra.mxu0 0.0
    %94 = vmatprep.subr.mxu0 0.0
    %95 = vmatpush1.xpose.msra.mxu0 0.0
    %96 = vmatprep.subr.mxu0 0.0
    %97 = vmatpush1.xpose.msra.mxu0 0.0
    %98 = vmatprep.subr.mxu0 0.0
    %99 = vmatpush1.xpose.msra.mxu0 0.0
    %100 = vmatprep.subr.mxu0 0.0
    %101 = vmatpush1.xpose.msra.mxu0 0.0
    %102 = vmatprep.subr.mxu0 0.0
    %103 = vmatpush1.xpose.msra.mxu0 0.0
    %104 = vmatprep.subr.mxu0 0.0
    %105 = vmatpush1.xpose.msra.mxu0 0.0
    %106 = vmatprep.subr.mxu0 0.0
    %107 = vmatpush1.xpose.msra.mxu0 0.0
    %108 = vmatprep.subr.mxu0 0.0
    %109 = vmatpush1.xpose.msra.mxu0 0.0
    %110 = vmatprep.subr.mxu0 0.0
    %111 = vmatpush1.xpose.msra.mxu0 0.0
    %112 = vmatprep.subr.mxu0 0.0
    %113 = vmatpush1.xpose.msra.mxu0 0.0
    %114 = vmatprep.subr.mxu0 0.0
    %115 = vmatpush1.xpose.msra.mxu0 0.0
    %116 = vmatprep.subr.mxu0 0.0
    %117 = vmatpush1.xpose.msra.mxu0 0.0
    %118 = vmatprep.subr.mxu0 0.0
    %119 = vmatpush1.xpose.msra.mxu0 0.0
    %120 = vmatprep.mubr.f32.mxu0 %v16
    %121 = vmatmul.mubr.f32.gmra.mrb[0].mxu0 %v15
    %v122 = vpop.f32.mrb[0].mxu0
    %v123 = vadd.f32 %v54, %v122
    %v124 = vpop.f32.mrb[0].mxu0
    %125 = vdwg.mxu0
    %126 = vst [vmem:[#allocation2] sm:$0xff] %v123
    // Predicated region
    $region14: #{baseline_classifier.1} parent=1 // pred_check
      _
    $region15: #{baseline_classifier.1} parent=1 // pred_check_branch
      %128 = sbr.rel (0) target = $region17
    $region16: #{baseline_classifier.1} parent=1 // pred_region
      %s130 = ssub.s32 128, 128
      %131 = vsyncadd [#allocation3], %s130
      %s133 = sshll.u32 [#allocation2], 4
      %s134 = int_to_ptr.vmem [resolvable:$true] %s133
      %136 = dma.vmem_to_hbm [thread:$0]  %s134, 128, %s3, [#allocation3]
    $region17: #{baseline_classifier.1} parent=1 // pred_fallthru
      _
    // Predicated region
    $region18: #{baseline_classifier.1} parent=1 // pred_check
      _
    $region19: #{baseline_classifier.1} parent=1 // pred_check_branch
      %138 = sbr.rel (0) target = $region21
    $region20: #{baseline_classifier.1} parent=1 // pred_region
      %139 = dma.done [#allocation3], 128
    $region21: #{baseline_classifier.1} parent=1 // pred_fallthru
      _
    %140 = vsyncpa [#allocation3], 1

</llo_original>
